<compile_context>
chip_gen: v7x
topology: tpu7x:2x2x1
jax: 0.10.0
libtpu: 0.0.40
codegen_flags: <defaults>
</compile_context>

<pallas_src>
import functools

import jax
import jax.numpy as jnp
from jax.experimental import pallas as pl
from jax.experimental.pallas import tpu as pltpu

LATENT = 100
LATENT_PAD = 128          # lane-dense padded K for the first matmul
H1, H2, H3 = 128, 256, 512
OUT = 30                  # creditcard.csv feature count after dropping 'Class'
OUT_PAD = 128             # lane-dense padded output width
NEG_SLOPE = 0.2


def _leaky_relu(x):
    return jnp.where(x >= 0, x, NEG_SLOPE * x)


def _round_up(x, m):
    return ((x + m - 1) // m) * m


def generator_kernel(z_ref,
                     w1_ref, b1_ref,
                     w2_ref, b2_ref,
                     w3_ref, b3_ref,
                     w4_ref, b4_ref,
                     out_ref):
    # Whole 4-layer MLP fused for one batch tile. All matmuls run on the MXU
    # in bf16 with f32 accumulation; bias / LeakyReLU / tanh are done in f32.
    z = z_ref[...]                                             # (tb, 128) bf16

    h = jnp.dot(z, w1_ref[...],
                preferred_element_type=jnp.float32) + b1_ref[...]
    h = _leaky_relu(h)

    h = jnp.dot(h.astype(jnp.bfloat16), w2_ref[...],
                preferred_element_type=jnp.float32) + b2_ref[...]
    h = _leaky_relu(h)

    h = jnp.dot(h.astype(jnp.bfloat16), w3_ref[...],
                preferred_element_type=jnp.float32) + b3_ref[...]
    h = _leaky_relu(h)

    h = jnp.dot(h.astype(jnp.bfloat16), w4_ref[...],
                preferred_element_type=jnp.float32) + b4_ref[...]
    out_ref[...] = jnp.tanh(h).astype(out_ref.dtype)


@functools.partial(jax.jit, static_argnames=("block_batch",))
def generator_forward(z, params, *, block_batch=1024):
    """z: (B, 100) f32. params: 4x (w:(in,out), b:(1,out)) f32. -> (B, 30) f32."""
    (w1, b1), (w2, b2), (w3, b3), (w4, b4) = params
    B = z.shape[0]

    # Batch tile: multiple of 16 (bf16 sublane packing); pad B up to a tile
    # multiple so the last tile is full-size (ragged batches, e.g. B=10000).
    tb = min(block_batch, _round_up(B, 16))
    tb = _round_up(tb, 16)
    B_pad = _round_up(B, tb)
    grid = (B_pad // tb,)

    # Lane-dense padding: latent 100 -> 128, output 30 -> 128 (zero columns).
    z_p = jnp.pad(z.astype(jnp.bfloat16),
                  ((0, B_pad - B), (0, LATENT_PAD - LATENT)))
    w1_p = jnp.pad(w1, ((0, LATENT_PAD - LATENT), (0, 0))).astype(jnp.bfloat16)
    w2_b = w2.astype(jnp.bfloat16)
    w3_b = w3.astype(jnp.bfloat16)
    w4_p = jnp.pad(w4, ((0, 0), (0, OUT_PAD - OUT))).astype(jnp.bfloat16)
    b4_p = jnp.pad(b4, ((0, 0), (0, OUT_PAD - OUT)))   # biases stay f32

    def batch_spec(feat):
        return pl.BlockSpec((tb, feat), lambda i: (i, 0))

    def full_spec(shape):
        return pl.BlockSpec(shape, lambda i: (0, 0))

    weight_elems = LATENT_PAD * H1 + H1 * H2 + H2 * H3 + H3 * OUT_PAD
    flops = 2 * B_pad * weight_elems
    bytes_accessed = (B_pad * LATENT_PAD * 2            # z in (bf16)
                      + B_pad * OUT_PAD * 4             # out (f32)
                      + weight_elems * 2                # weights (bf16)
                      + (H1 + H2 + H3 + OUT_PAD) * 4)   # biases (f32)

    out = pl.pallas_call(
        generator_kernel,
        out_shape=jax.ShapeDtypeStruct((B_pad, OUT_PAD), jnp.float32),
        grid_spec=pltpu.PrefetchScalarGridSpec(
            num_scalar_prefetch=0,
            grid=grid,
            in_specs=[
                batch_spec(LATENT_PAD),
                full_spec((LATENT_PAD, H1)), full_spec((1, H1)),
                full_spec((H1, H2)),         full_spec((1, H2)),
                full_spec((H2, H3)),         full_spec((1, H3)),
                full_spec((H3, OUT_PAD)),    full_spec((1, OUT_PAD)),
            ],
            out_specs=batch_spec(OUT_PAD),
        ),
        compiler_params=pltpu.CompilerParams(
            dimension_semantics=("parallel",),
            vmem_limit_bytes=32 * 1024 * 1024),
        cost_estimate=pl.CostEstimate(
            flops=flops,
            transcendentals=B_pad * OUT_PAD,
            bytes_accessed=bytes_accessed),
    )(z_p, w1_p, b1, w2_b, b2, w3_b, b3, w4_p, b4_p)

    # Drop the batch padding and the zero-padded output lanes.
    return out[:B, :OUT]


def init_params(key):
    """Deterministic init mimicking PyTorch Linear's U(-1/sqrt(fan_in), +)."""
    dims = [(LATENT, H1), (H1, H2), (H2, H3), (H3, OUT)]
    params = []
    for (fan_in, fan_out) in dims:
        key, kw, kb = jax.random.split(key, 3)
        bound = 1.0 / jnp.sqrt(jnp.float32(fan_in))
        w = jax.random.uniform(kw, (fan_in, fan_out), jnp.float32,
                               minval=-bound, maxval=bound)
        b = jax.random.uniform(kb, (1, fan_out), jnp.float32,
                               minval=-bound, maxval=bound)
        params.append((w, b))
    return params


def reference_forward(z, params):
    """Pure-JAX f32 reference (matches the PyTorch module)."""
    (w1, b1), (w2, b2), (w3, b3), (w4, b4) = params
    h = _leaky_relu(z @ w1 + b1)
    h = _leaky_relu(h @ w2 + b2)
    h = _leaky_relu(h @ w3 + b3)
    return jnp.tanh(h @ w4 + b4)


if __name__ == "__main__":
    key = jax.random.PRNGKey(0)
    kz, kp = jax.random.split(key)

    batch = 8  # small demo batch (real workload is num_samples=10000)
    z = jax.random.normal(kz, (batch, LATENT), jnp.float32)
    params = init_params(kp)

    out = generator_forward(z, params, block_batch=256)
    out = jax.block_until_ready(out)

    ref = reference_forward(z, params)
    assert out.shape == (batch, OUT), out.shape
    # bf16 matmuls with f32 accumulation vs. f32 reference -> looser tolerance.
    assert jnp.allclose(out, ref, atol=3e-2, rtol=3e-2), \
        float(jnp.max(jnp.abs(out - ref)))

    print("KERNEL_OK")
</pallas_src>

<mosaic_0001>
module attributes {stable_mosaic.version = 11 : i64} {
  func.func @generator_kernel(%arg0: i32, %arg1: memref<16x128xbf16, #tpu.memory_space<vmem>>, %arg2: memref<128x128xbf16, #tpu.memory_space<vmem>>, %arg3: memref<1x128xf32, #tpu.memory_space<vmem>>, %arg4: memref<128x256xbf16, #tpu.memory_space<vmem>>, %arg5: memref<1x256xf32, #tpu.memory_space<vmem>>, %arg6: memref<256x512xbf16, #tpu.memory_space<vmem>>, %arg7: memref<1x512xf32, #tpu.memory_space<vmem>>, %arg8: memref<512x128xbf16, #tpu.memory_space<vmem>>, %arg9: memref<1x128xf32, #tpu.memory_space<vmem>>, %arg10: memref<16x128xf32, #tpu.memory_space<vmem>>) attributes {dimension_semantics = [#tpu.dimension_semantics<parallel>], iteration_bounds = array<i64: 1>, scalar_prefetch = 0 : i64, scratch_operands = 0 : i64, tpu.core_type = #tpu.core_type<tc>, window_params = [{transform_indices = @transform_0, window_bounds = array<i64: 16, 128>}, {pipeline_mode = #tpu.pipeline_mode<synchronous>, transform_indices = @transform_1, window_bounds = array<i64: 128, 128>}, {pipeline_mode = #tpu.pipeline_mode<synchronous>, transform_indices = @transform_2, window_bounds = array<i64: 1, 128>}, {pipeline_mode = #tpu.pipeline_mode<synchronous>, transform_indices = @transform_3, window_bounds = array<i64: 128, 256>}, {pipeline_mode = #tpu.pipeline_mode<synchronous>, transform_indices = @transform_4, window_bounds = array<i64: 1, 256>}, {pipeline_mode = #tpu.pipeline_mode<synchronous>, transform_indices = @transform_5, window_bounds = array<i64: 256, 512>}, {pipeline_mode = #tpu.pipeline_mode<synchronous>, transform_indices = @transform_6, window_bounds = array<i64: 1, 512>}, {pipeline_mode = #tpu.pipeline_mode<synchronous>, transform_indices = @transform_7, window_bounds = array<i64: 512, 128>}, {pipeline_mode = #tpu.pipeline_mode<synchronous>, transform_indices = @transform_8, window_bounds = array<i64: 1, 128>}, {transform_indices = @transform_9, window_bounds = array<i64: 16, 128>}]} {
    %c0 = arith.constant 0 : index
    %c0_0 = arith.constant 0 : index
    %0 = vector.load %arg1[%c0, %c0_0] : memref<16x128xbf16, #tpu.memory_space<vmem>>, vector<16x128xbf16>
    %c0_1 = arith.constant 0 : index
    %c0_2 = arith.constant 0 : index
    %1 = vector.load %arg2[%c0_1, %c0_2] : memref<128x128xbf16, #tpu.memory_space<vmem>>, vector<128x128xbf16>
    %cst = arith.constant dense<0.000000e+00> : vector<16x128xf32>
    %2 = tpu.matmul %0, %1, %cst {dimension_numbers = #tpu.dot_dimension_numbers<[1], [0], [0], [1], [0, 0, 1, 1], [], []>} : vector<16x128xbf16>, vector<128x128xbf16>, vector<16x128xf32> -> vector<16x128xf32>
    %c0_3 = arith.constant 0 : index
    %c0_4 = arith.constant 0 : index
    %3 = vector.load %arg3[%c0_3, %c0_4] : memref<1x128xf32, #tpu.memory_space<vmem>>, vector<1x128xf32>
    %4 = vector.broadcast %3 : vector<1x128xf32> to vector<16x128xf32>
    %5 = arith.addf %2, %4 : vector<16x128xf32>
    %cst_5 = arith.constant 0.000000e+00 : f32
    %6 = vector.broadcast %cst_5 : f32 to vector<16x128xf32>
    %7 = arith.cmpf oge, %5, %6 : vector<16x128xf32>
    %cst_6 = arith.constant 2.000000e-01 : f32
    %8 = vector.broadcast %cst_6 : f32 to vector<16x128xf32>
    %9 = arith.mulf %8, %5 : vector<16x128xf32>
    %10 = arith.select %7, %5, %9 : vector<16x128xi1>, vector<16x128xf32>
    %11 = arith.truncf %10 : vector<16x128xf32> to vector<16x128xbf16>
    %c0_7 = arith.constant 0 : index
    %c0_8 = arith.constant 0 : index
    %12 = vector.load %arg4[%c0_7, %c0_8] : memref<128x256xbf16, #tpu.memory_space<vmem>>, vector<128x256xbf16>
    %cst_9 = arith.constant dense<0.000000e+00> : vector<16x256xf32>
    %13 = tpu.matmul %11, %12, %cst_9 {dimension_numbers = #tpu.dot_dimension_numbers<[1], [0], [0], [1], [0, 0, 1, 1], [], []>} : vector<16x128xbf16>, vector<128x256xbf16>, vector<16x256xf32> -> vector<16x256xf32>
    %c0_10 = arith.constant 0 : index
    %c0_11 = arith.constant 0 : index
    %14 = vector.load %arg5[%c0_10, %c0_11] : memref<1x256xf32, #tpu.memory_space<vmem>>, vector<1x256xf32>
    %15 = vector.broadcast %14 : vector<1x256xf32> to vector<16x256xf32>
    %16 = arith.addf %13, %15 : vector<16x256xf32>
    %cst_12 = arith.constant 0.000000e+00 : f32
    %17 = vector.broadcast %cst_12 : f32 to vector<16x256xf32>
    %18 = arith.cmpf oge, %16, %17 : vector<16x256xf32>
    %cst_13 = arith.constant 2.000000e-01 : f32
    %19 = vector.broadcast %cst_13 : f32 to vector<16x256xf32>
    %20 = arith.mulf %19, %16 : vector<16x256xf32>
    %21 = arith.select %18, %16, %20 : vector<16x256xi1>, vector<16x256xf32>
    %22 = arith.truncf %21 : vector<16x256xf32> to vector<16x256xbf16>
    %c0_14 = arith.constant 0 : index
    %c0_15 = arith.constant 0 : index
    %23 = vector.load %arg6[%c0_14, %c0_15] : memref<256x512xbf16, #tpu.memory_space<vmem>>, vector<256x512xbf16>
    %cst_16 = arith.constant dense<0.000000e+00> : vector<16x512xf32>
    %24 = tpu.matmul %22, %23, %cst_16 {dimension_numbers = #tpu.dot_dimension_numbers<[1], [0], [0], [1], [0, 0, 1, 1], [], []>} : vector<16x256xbf16>, vector<256x512xbf16>, vector<16x512xf32> -> vector<16x512xf32>
    %c0_17 = arith.constant 0 : index
    %c0_18 = arith.constant 0 : index
    %25 = vector.load %arg7[%c0_17, %c0_18] : memref<1x512xf32, #tpu.memory_space<vmem>>, vector<1x512xf32>
    %26 = vector.broadcast %25 : vector<1x512xf32> to vector<16x512xf32>
    %27 = arith.addf %24, %26 : vector<16x512xf32>
    %cst_19 = arith.constant 0.000000e+00 : f32
    %28 = vector.broadcast %cst_19 : f32 to vector<16x512xf32>
    %29 = arith.cmpf oge, %27, %28 : vector<16x512xf32>
    %cst_20 = arith.constant 2.000000e-01 : f32
    %30 = vector.broadcast %cst_20 : f32 to vector<16x512xf32>
    %31 = arith.mulf %30, %27 : vector<16x512xf32>
    %32 = arith.select %29, %27, %31 : vector<16x512xi1>, vector<16x512xf32>
    %33 = arith.truncf %32 : vector<16x512xf32> to vector<16x512xbf16>
    %c0_21 = arith.constant 0 : index
    %c0_22 = arith.constant 0 : index
    %34 = vector.load %arg8[%c0_21, %c0_22] : memref<512x128xbf16, #tpu.memory_space<vmem>>, vector<512x128xbf16>
    %cst_23 = arith.constant dense<0.000000e+00> : vector<16x128xf32>
    %35 = tpu.matmul %33, %34, %cst_23 {dimension_numbers = #tpu.dot_dimension_numbers<[1], [0], [0], [1], [0, 0, 1, 1], [], []>} : vector<16x512xbf16>, vector<512x128xbf16>, vector<16x128xf32> -> vector<16x128xf32>
    %c0_24 = arith.constant 0 : index
    %c0_25 = arith.constant 0 : index
    %36 = vector.load %arg9[%c0_24, %c0_25] : memref<1x128xf32, #tpu.memory_space<vmem>>, vector<1x128xf32>
    %37 = vector.broadcast %36 : vector<1x128xf32> to vector<16x128xf32>
    %38 = arith.addf %35, %37 : vector<16x128xf32>
    %39 = math.tanh %38 : vector<16x128xf32>
    %c0_26 = arith.constant 0 : index
    %c0_27 = arith.constant 0 : index
    %40 = vector.load %arg10[%c0_26, %c0_27] : memref<16x128xf32, #tpu.memory_space<vmem>>, vector<16x128xf32>
    tpu.vector_store %arg10[%c0_26, %c0_27], %39 {strides = array<i32>} : memref<16x128xf32, #tpu.memory_space<vmem>>, vector<16x128xf32>,
    return
  }
  func.func @transform_0(%arg0: i32) -> (i32, i32) {
    %c0_i32 = arith.constant 0 : i32
    %c0_i32_0 = arith.constant 0 : i32
    return %arg0, %c0_i32 : i32, i32
  }
  func.func @transform_1(%arg0: i32) -> (i32, i32) {
    %c0_i32 = arith.constant 0 : i32
    %c0_i32_0 = arith.constant 0 : i32
    %c0_i32_1 = arith.constant 0 : i32
    return %c0_i32, %c0_i32_0 : i32, i32
  }
  func.func @transform_2(%arg0: i32) -> (i32, i32) {
    %c0_i32 = arith.constant 0 : i32
    %c0_i32_0 = arith.constant 0 : i32
    %c0_i32_1 = arith.constant 0 : i32
    return %c0_i32, %c0_i32_0 : i32, i32
  }
  func.func @transform_3(%arg0: i32) -> (i32, i32) {
    %c0_i32 = arith.constant 0 : i32
    %c0_i32_0 = arith.constant 0 : i32
    %c0_i32_1 = arith.constant 0 : i32
    return %c0_i32, %c0_i32_0 : i32, i32
  }
  func.func @transform_4(%arg0: i32) -> (i32, i32) {
    %c0_i32 = arith.constant 0 : i32
    %c0_i32_0 = arith.constant 0 : i32
    %c0_i32_1 = arith.constant 0 : i32
    return %c0_i32, %c0_i32_0 : i32, i32
  }
  func.func @transform_5(%arg0: i32) -> (i32, i32) {
    %c0_i32 = arith.constant 0 : i32
    %c0_i32_0 = arith.constant 0 : i32
    %c0_i32_1 = arith.constant 0 : i32
    return %c0_i32, %c0_i32_0 : i32, i32
  }
  func.func @transform_6(%arg0: i32) -> (i32, i32) {
    %c0_i32 = arith.constant 0 : i32
    %c0_i32_0 = arith.constant 0 : i32
    %c0_i32_1 = arith.constant 0 : i32
    return %c0_i32, %c0_i32_0 : i32, i32
  }
  func.func @transform_7(%arg0: i32) -> (i32, i32) {
    %c0_i32 = arith.constant 0 : i32
    %c0_i32_0 = arith.constant 0 : i32
    %c0_i32_1 = arith.constant 0 : i32
    return %c0_i32, %c0_i32_0 : i32, i32
  }
  func.func @transform_8(%arg0: i32) -> (i32, i32) {
    %c0_i32 = arith.constant 0 : i32
    %c0_i32_0 = arith.constant 0 : i32
    %c0_i32_1 = arith.constant 0 : i32
    return %c0_i32, %c0_i32_0 : i32, i32
  }
  func.func @transform_9(%arg0: i32) -> (i32, i32) {
    %c0_i32 = arith.constant 0 : i32
    %c0_i32_0 = arith.constant 0 : i32
    return %arg0, %c0_i32 : i32, i32
  }
}

</mosaic_0001>

<llo_original>
// kernel: generator_forward.1
$region0: #{generator_forward.1}
  #allocation0 [shape = 'u32[]', space=smem, size = 0x4, offset = 0x4, fixed_abs, tag = 'smem constant byte address 0x4 - core index']
  #allocation1 [shape = 'u32[144,128]{1,0:T(1,128)}', space=vmem, size = 0x12000, scoped, tag = 'internal scratch']
  %s0 = inlined_call_operand.vmem [shape: bf16[16,128], index: 0, kind: input, shape index: {}]
  %s1 = inlined_call_operand.vmem [shape: bf16[128,128], index: 1, kind: input, shape index: {}]
  %s2 = inlined_call_operand.vmem [shape: f32[1,128], index: 2, kind: input, shape index: {}]
  %s3 = inlined_call_operand.vmem [shape: bf16[128,256], index: 3, kind: input, shape index: {}]
  %s4 = inlined_call_operand.vmem [shape: f32[1,256], index: 4, kind: input, shape index: {}]
  %s5 = inlined_call_operand.vmem [shape: bf16[256,512], index: 5, kind: input, shape index: {}]
  %s6 = inlined_call_operand.vmem [shape: f32[1,512], index: 6, kind: input, shape index: {}]
  %s7 = inlined_call_operand.vmem [shape: bf16[512,128], index: 7, kind: input, shape index: {}]
  %s8 = inlined_call_operand.vmem [shape: f32[1,128], index: 8, kind: input, shape index: {}]
  %s9 = inlined_call_operand.vmem [shape: f32[16,128], index: 9, kind: output, shape index: {}]
  %s10 = sld [smem:[#allocation0]]
  $region46: #{generator_forward.1} parent=0
    _
  %s12 = ssub.s32 1, %s10
  %s13 = scalar_select 0, %s12, %s10
  // Predicated region
  $region2: #{generator_forward.1} parent=0 // pred_check
    _
  $region3: #{generator_forward.1} parent=0 // pred_check_branch
    %15 = sbr.rel (0) target = $region5
  $region4: #{generator_forward.1} parent=0 // pred_region
    _
  $region5: #{generator_forward.1} parent=0 // pred_fallthru
    _
  // Predicated region
  $region6: #{generator_forward.1} parent=0 // pred_check
    _
  $region7: #{generator_forward.1} parent=0 // pred_check_branch
    %17 = sbr.rel (0) target = $region9
  $region8: #{generator_forward.1} parent=0 // pred_region
    _
  $region9: #{generator_forward.1} parent=0 // pred_fallthru
    _
  // Predicated region
  $region10: #{generator_forward.1} parent=0 // pred_check
    _
  $region11: #{generator_forward.1} parent=0 // pred_check_branch
    %19 = sbr.rel (0) target = $region13
  $region12: #{generator_forward.1} parent=0 // pred_region
    _
  $region13: #{generator_forward.1} parent=0 // pred_fallthru
    _
  // Predicated region
  $region14: #{generator_forward.1} parent=0 // pred_check
    _
  $region15: #{generator_forward.1} parent=0 // pred_check_branch
    %21 = sbr.rel (0) target = $region17
  $region16: #{generator_forward.1} parent=0 // pred_region
    _
  $region17: #{generator_forward.1} parent=0 // pred_fallthru
    _
  // Predicated region
  $region18: #{generator_forward.1} parent=0 // pred_check
    _
  $region19: #{generator_forward.1} parent=0 // pred_check_branch
    %23 = sbr.rel (0) target = $region21
  $region20: #{generator_forward.1} parent=0 // pred_region
    _
  $region21: #{generator_forward.1} parent=0 // pred_fallthru
    _
  // Predicated region
  $region22: #{generator_forward.1} parent=0 // pred_check
    _
  $region23: #{generator_forward.1} parent=0 // pred_check_branch
    %25 = sbr.rel (0) target = $region25
  $region24: #{generator_forward.1} parent=0 // pred_region
    _
  $region25: #{generator_forward.1} parent=0 // pred_fallthru
    _
  // Predicated region
  $region26: #{generator_forward.1} parent=0 // pred_check
    _
  $region27: #{generator_forward.1} parent=0 // pred_check_branch
    %27 = sbr.rel (0) target = $region29
  $region28: #{generator_forward.1} parent=0 // pred_region
    _
  $region29: #{generator_forward.1} parent=0 // pred_fallthru
    _
  // Predicated region
  $region30: #{generator_forward.1} parent=0 // pred_check
    _
  $region31: #{generator_forward.1} parent=0 // pred_check_branch
    %29 = sbr.rel (0) target = $region33
  $region32: #{generator_forward.1} parent=0 // pred_region
    _
  $region33: #{generator_forward.1} parent=0 // pred_fallthru
    _
  // Predicated region
  $region34: #{generator_forward.1} parent=0 // pred_check
    _
  $region35: #{generator_forward.1} parent=0 // pred_check_branch
    %31 = sbr.rel (0) target = $region37
  $region36: #{generator_forward.1} parent=0 // pred_region
    _
  $region37: #{generator_forward.1} parent=0 // pred_fallthru
    _
  %v33 = vld [vmem:[%s0] sm:$0xf]
  %v34 = vld [vmem:[%s0 + $0x4] sm:$0xf]
  %v35 = vld [vmem:[%s1] sm:$0xf]
  %v36 = vld [vmem:[%s1 + $0x4] sm:$0xf]
  %v37 = vld [vmem:[%s1 + $0x8] sm:$0xf]
  %v38 = vld [vmem:[%s1 + $0xc] sm:$0xf]
  %v39 = vld [vmem:[%s1 + $0x10] sm:$0xf]
  %v40 = vld [vmem:[%s1 + $0x14] sm:$0xf]
  %v41 = vld [vmem:[%s1 + $0x18] sm:$0xf]
  %v42 = vld [vmem:[%s1 + $0x1c] sm:$0xf]
  %v43 = vld [vmem:[%s1 + $0x20] sm:$0xf]
  %v44 = vld [vmem:[%s1 + $0x24] sm:$0xf]
  %v45 = vld [vmem:[%s1 + $0x28] sm:$0xf]
  %v46 = vld [vmem:[%s1 + $0x2c] sm:$0xf]
  %v47 = vld [vmem:[%s1 + $0x30] sm:$0xf]
  %v48 = vld [vmem:[%s1 + $0x34] sm:$0xf]
  %v49 = vld [vmem:[%s1 + $0x38] sm:$0xf]
  %v50 = vld [vmem:[%s1 + $0x3c] sm:$0xf]
  %v51 = vld [vmem:[%s2] sm:$0x1]
  %v53 = vlaneseq
  %v54 = vshrl.u32 %v53, 7
  %v55 = vsub.s32 0, %v54
  %v56 = vrot.slane %v51, %v55
  %v60 = vunpack.c.l.b16 %v33
  %v61 = vunpack.c.l.b16 %v34
  %v62 = vpack.c.b16 %v61, %v60
  %v80 = vunpack.c.l.b16 %v35
  %v81 = vunpack.c.l.b16 %v36
  %v82 = vunpack.c.l.b16 %v37
  %v83 = vunpack.c.l.b16 %v38
  %v84 = vunpack.c.l.b16 %v39
  %v85 = vunpack.c.l.b16 %v40
  %v86 = vunpack.c.l.b16 %v41
  %v87 = vunpack.c.l.b16 %v42
  %v88 = vunpack.c.l.b16 %v43
  %v89 = vunpack.c.l.b16 %v44
  %v90 = vunpack.c.l.b16 %v45
  %v91 = vunpack.c.l.b16 %v46
  %v92 = vunpack.c.l.b16 %v47
  %v93 = vunpack.c.l.b16 %v48
  %v94 = vunpack.c.l.b16 %v49
  %v95 = vunpack.c.l.b16 %v50
  %v96 = vpack.c.b16 %v81, %v80
  %v97 = vpack.c.b16 %v83, %v82
  %v98 = vpack.c.b16 %v85, %v84
  %v99 = vpack.c.b16 %v87, %v86
  %v100 = vpack.c.b16 %v89, %v88
  %v101 = vpack.c.b16 %v91, %v90
  %v102 = vpack.c.b16 %v93, %v92
  %v103 = vpack.c.b16 %v95, %v94
  %112 = vmatprep.subr.bf16.mxu0 0
  %113 = vmatpush1.bf16.msra.mxu0 %v96
  %114 = vmatprep.subr.bf16.mxu0 0
  %115 = vmatpush1.bf16.msra.mxu0 %v97
  %116 = vmatprep.subr.bf16.mxu0 0
  %117 = vmatpush1.bf16.msra.mxu0 %v98
  %118 = vmatprep.subr.bf16.mxu0 0
  %119 = vmatpush1.bf16.msra.mxu0 %v99
  %120 = vmatprep.subr.bf16.mxu0 0
  %121 = vmatpush1.bf16.msra.mxu0 %v100
  %122 = vmatprep.subr.bf16.mxu0 0
  %123 = vmatpush1.bf16.msra.mxu0 %v101
  %124 = vmatprep.subr.bf16.mxu0 0
  %125 = vmatpush1.bf16.msra.mxu0 %v102
  %126 = vmatprep.subr.bf16.mxu0 0
  %127 = vmatpush1.bf16.msra.mxu0 %v103
  %128 = vmatprep.subr.bf16.mxu0 0
  %129 = vmatpush1.bf16.msra.mxu0 0
  %130 = vmatprep.subr.bf16.mxu0 0
  %131 = vmatpush1.bf16.msra.mxu0 0
  %132 = vmatprep.subr.bf16.mxu0 0
  %133 = vmatpush1.bf16.msra.mxu0 0
  %134 = vmatprep.subr.bf16.mxu0 0
  %135 = vmatpush1.bf16.msra.mxu0 0
  %136 = vmatprep.subr.bf16.mxu0 0
  %137 = vmatpush1.bf16.msra.mxu0 0
  %138 = vmatprep.subr.bf16.mxu0 0
  %139 = vmatpush1.bf16.msra.mxu0 0
  %140 = vmatprep.subr.bf16.mxu0 0
  %141 = vmatpush1.bf16.msra.mxu0 0
  %142 = vmatprep.subr.bf16.mxu0 0
  %143 = vmatpush1.bf16.msra.mxu0 0
  %144 = vmatprep.mubr.bf16.mxu0 0
  %145 = vmatmul.mubr.bf16.gmra.mrb[0].mxu0 %v62
  %v146 = vpop.f32.mrb[0].mxu0
  %v147 = vadd.f32 %v56, %v146
  %v148 = vpop.f32.mrb[0].mxu0
  %v149 = vpop.f32.mrb[0].mxu0
  %v150 = vadd.f32 %v56, %v149
  %v151 = vpop.f32.mrb[0].mxu0
  %152 = vdwg.mxu0
  %vm153 = vcmp.ge.f32.partialorder %v147, 0.0
  %vm154 = vcmp.ge.f32.partialorder %v150, 0.0
  %v155 = vmul.f32 %v147, 0.2
  %v156 = vmul.f32 %v150, 0.2
  %v157 = vsel %vm153, %v147, %v155
  %v158 = vsel %vm154, %v150, %v156
  %v159 = vpack.c.bf16 %v158, %v157
  %v160 = vld [vmem:[%s3] sm:$0xff]
  %v161 = vld [vmem:[%s3 + $0x8] sm:$0xff]
  %v162 = vld [vmem:[%s3 + $0x10] sm:$0xff]
  %v163 = vld [vmem:[%s3 + $0x18] sm:$0xff]
  %v164 = vld [vmem:[%s3 + $0x20] sm:$0xff]
  %v165 = vld [vmem:[%s3 + $0x28] sm:$0xff]
  %v166 = vld [vmem:[%s3 + $0x30] sm:$0xff]
  %v167 = vld [vmem:[%s3 + $0x38] sm:$0xff]
  %v168 = vld [vmem:[%s3 + $0x40] sm:$0xff]
  %v169 = vld [vmem:[%s3 + $0x48] sm:$0xff]
  %v170 = vld [vmem:[%s3 + $0x50] sm:$0xff]
  %v171 = vld [vmem:[%s3 + $0x58] sm:$0xff]
  %v172 = vld [vmem:[%s3 + $0x60] sm:$0xff]
  %v173 = vld [vmem:[%s3 + $0x68] sm:$0xff]
  %v174 = vld [vmem:[%s3 + $0x70] sm:$0xff]
  %v175 = vld [vmem:[%s3 + $0x78] sm:$0xff]
  %v176 = vld [vmem:[%s4] sm:$0x3]
  %v178 = vlaneseq
  %v179 = vshrl.u32 %v178, 7
  %v180 = vsub.s32 0, %v179
  %v181 = vrot.slane %v176, %v180
  %v182 = vlaneseq
  %v183 = vshrl.u32 %v182, 7
  %v184 = vsub.s32 1, %v183
  %v185 = vrot.slane %v176, %v184
  %v204 = vunpack.c.l.b16 %v160
  %v205 = vunpack.c.h.b16 %v160
  %v206 = vunpack.c.l.b16 %v161
  %v207 = vunpack.c.h.b16 %v161
  %v208 = vunpack.c.l.b16 %v162
  %v209 = vunpack.c.h.b16 %v162
  %v210 = vunpack.c.l.b16 %v163
  %v211 = vunpack.c.h.b16 %v163
  %v212 = vunpack.c.l.b16 %v164
  %v213 = vunpack.c.h.b16 %v164
  %v214 = vunpack.c.l.b16 %v165
  %v215 = vunpack.c.h.b16 %v165
  %v216 = vunpack.c.l.b16 %v166
  %v217 = vunpack.c.h.b16 %v166
  %v218 = vunpack.c.l.b16 %v167
  %v219 = vunpack.c.h.b16 %v167
  %v220 = vunpack.c.l.b16 %v168
  %v221 = vunpack.c.h.b16 %v168
  %v222 = vunpack.c.l.b16 %v169
  %v223 = vunpack.c.h.b16 %v169
  %v224 = vunpack.c.l.b16 %v170
  %v225 = vunpack.c.h.b16 %v170
  %v226 = vunpack.c.l.b16 %v171
  %v227 = vunpack.c.h.b16 %v171
  %v228 = vunpack.c.l.b16 %v172
  %v229 = vunpack.c.h.b16 %v172
  %v230 = vunpack.c.l.b16 %v173
  %v231 = vunpack.c.h.b16 %v173
  %v232 = vunpack.c.l.b16 %v174
  %v233 = vunpack.c.h.b16 %v174
  %v234 = vunpack.c.l.b16 %v175
  %v235 = vunpack.c.h.b16 %v175
  %v236 = vpack.c.b16 %v206, %v204
  %v237 = vpack.c.b16 %v207, %v205
  %v238 = vpack.c.b16 %v210, %v208
  %v239 = vpack.c.b16 %v211, %v209
  %v240 = vpack.c.b16 %v214, %v212
  %v241 = vpack.c.b16 %v215, %v213
  %v242 = vpack.c.b16 %v218, %v216
  %v243 = vpack.c.b16 %v219, %v217
  %v244 = vpack.c.b16 %v222, %v220
  %v245 = vpack.c.b16 %v223, %v221
  %v246 = vpack.c.b16 %v226, %v224
  %v247 = vpack.c.b16 %v227, %v225
  %v248 = vpack.c.b16 %v230, %v228
  %v249 = vpack.c.b16 %v231, %v229
  %v250 = vpack.c.b16 %v234, %v232
  %v251 = vpack.c.b16 %v235, %v233
  %268 = vmatprep.subr.bf16.mxu0 %v237
  %269 = vmatpush1.bf16.msra.mxu0 %v236
  %270 = vmatprep.subr.bf16.mxu0 %v239
  %271 = vmatpush1.bf16.msra.mxu0 %v238
  %272 = vmatprep.subr.bf16.mxu0 %v241
  %273 = vmatpush1.bf16.msra.mxu0 %v240
  %274 = vmatprep.subr.bf16.mxu0 %v243
  %275 = vmatpush1.bf16.msra.mxu0 %v242
  %276 = vmatprep.subr.bf16.mxu0 %v245
  %277 = vmatpush1.bf16.msra.mxu0 %v244
  %278 = vmatprep.subr.bf16.mxu0 %v247
  %279 = vmatpush1.bf16.msra.mxu0 %v246
  %280 = vmatprep.subr.bf16.mxu0 %v249
  %281 = vmatpush1.bf16.msra.mxu0 %v248
  %282 = vmatprep.subr.bf16.mxu0 %v251
  %283 = vmatpush1.bf16.msra.mxu0 %v250
  %284 = vmatprep.subr.bf16.mxu0 0
  %285 = vmatpush1.bf16.msra.mxu0 0
  %286 = vmatprep.subr.bf16.mxu0 0
  %287 = vmatpush1.bf16.msra.mxu0 0
  %288 = vmatprep.subr.bf16.mxu0 0
  %289 = vmatpush1.bf16.msra.mxu0 0
  %290 = vmatprep.subr.bf16.mxu0 0
  %291 = vmatpush1.bf16.msra.mxu0 0
  %292 = vmatprep.subr.bf16.mxu0 0
  %293 = vmatpush1.bf16.msra.mxu0 0
  %294 = vmatprep.subr.bf16.mxu0 0
  %295 = vmatpush1.bf16.msra.mxu0 0
  %296 = vmatprep.subr.bf16.mxu0 0
  %297 = vmatpush1.bf16.msra.mxu0 0
  %298 = vmatprep.subr.bf16.mxu0 0
  %299 = vmatpush1.bf16.msra.mxu0 0
  %300 = vmatprep.mubr.bf16.mxu0 0
  %301 = vmatmul.mubr.bf16.gmra.mrb[0].mxu0 %v159
  %v302 = vpop.f32.mrb[0].mxu0
  %v303 = vadd.f32 %v181, %v302
  %v304 = vpop.f32.mrb[0].mxu0
  %v305 = vadd.f32 %v185, %v304
  %v306 = vpop.f32.mrb[0].mxu0
  %v307 = vadd.f32 %v181, %v306
  %v308 = vpop.f32.mrb[0].mxu0
  %v309 = vadd.f32 %v185, %v308
  %310 = vdwg.mxu0
  %vm311 = vcmp.ge.f32.partialorder %v303, 0.0
  %vm312 = vcmp.ge.f32.partialorder %v305, 0.0
  %vm313 = vcmp.ge.f32.partialorder %v307, 0.0
  %vm314 = vcmp.ge.f32.partialorder %v309, 0.0
  %v315 = vmul.f32 %v303, 0.2
  %v316 = vmul.f32 %v305, 0.2
  %v317 = vmul.f32 %v307, 0.2
  %v318 = vmul.f32 %v309, 0.2
  %v319 = vsel %vm311, %v303, %v315
  %v320 = vsel %vm312, %v305, %v316
  %v321 = vsel %vm313, %v307, %v317
  %v322 = vsel %vm314, %v309, %v318
  %v323 = vpack.c.bf16 %v321, %v319
  %v324 = vpack.c.bf16 %v322, %v320
  %v325 = vld [vmem:[%s5] sm:$0xff]
  %v326 = vld [vmem:[%s5 + $0x8] sm:$0xff]
  %v327 = vld [vmem:[%s5 + $0x10] sm:$0xff]
  %v328 = vld [vmem:[%s5 + $0x18] sm:$0xff]
  %v329 = vld [vmem:[%s5 + $0x20] sm:$0xff]
  %v330 = vld [vmem:[%s5 + $0x28] sm:$0xff]
  %v331 = vld [vmem:[%s5 + $0x30] sm:$0xff]
  %v332 = vld [vmem:[%s5 + $0x38] sm:$0xff]
  %v333 = vld [vmem:[%s5 + $0x40] sm:$0xff]
  %v334 = vld [vmem:[%s5 + $0x48] sm:$0xff]
  %v335 = vld [vmem:[%s5 + $0x50] sm:$0xff]
  %v336 = vld [vmem:[%s5 + $0x58] sm:$0xff]
  %v337 = vld [vmem:[%s5 + $0x60] sm:$0xff]
  %v338 = vld [vmem:[%s5 + $0x68] sm:$0xff]
  %v339 = vld [vmem:[%s5 + $0x70] sm:$0xff]
  %v340 = vld [vmem:[%s5 + $0x78] sm:$0xff]
  %v341 = vld [vmem:[%s5 + $0x80] sm:$0xff]
  %v342 = vld [vmem:[%s5 + $0x88] sm:$0xff]
  %v343 = vld [vmem:[%s5 + $0x90] sm:$0xff]
  %v344 = vld [vmem:[%s5 + $0x98] sm:$0xff]
  %v345 = vld [vmem:[%s5 + $0xa0] sm:$0xff]
  %v346 = vld [vmem:[%s5 + $0xa8] sm:$0xff]
  %v347 = vld [vmem:[%s5 + $0xb0] sm:$0xff]
  %v348 = vld [vmem:[%s5 + $0xb8] sm:$0xff]
  %v349 = vld [vmem:[%s5 + $0xc0] sm:$0xff]
  %v350 = vld [vmem:[%s5 + $0xc8] sm:$0xff]
  %v351 = vld [vmem:[%s5 + $0xd0] sm:$0xff]
  %v352 = vld [vmem:[%s5 + $0xd8] sm:$0xff]
  %v353 = vld [vmem:[%s5 + $0xe0] sm:$0xff]
  %v354 = vld [vmem:[%s5 + $0xe8] sm:$0xff]
  %v355 = vld [vmem:[%s5 + $0xf0] sm:$0xff]
  %v356 = vld [vmem:[%s5 + $0xf8] sm:$0xff]
  %v357 = vld [vmem:[%s5 + $0x100] sm:$0xff]
  %v358 = vld [vmem:[%s5 + $0x108] sm:$0xff]
  %v359 = vld [vmem:[%s5 + $0x110] sm:$0xff]
  %v360 = vld [vmem:[%s5 + $0x118] sm:$0xff]
  %v361 = vld [vmem:[%s5 + $0x120] sm:$0xff]
  %v362 = vld [vmem:[%s5 + $0x128] sm:$0xff]
  %v363 = vld [vmem:[%s5 + $0x130] sm:$0xff]
  %v364 = vld [vmem:[%s5 + $0x138] sm:$0xff]
  %v365 = vld [vmem:[%s5 + $0x140] sm:$0xff]
  %v366 = vld [vmem:[%s5 + $0x148] sm:$0xff]
  %v367 = vld [vmem:[%s5 + $0x150] sm:$0xff]
  %v368 = vld [vmem:[%s5 + $0x158] sm:$0xff]
  %v369 = vld [vmem:[%s5 + $0x160] sm:$0xff]
  %v370 = vld [vmem:[%s5 + $0x168] sm:$0xff]
  %v371 = vld [vmem:[%s5 + $0x170] sm:$0xff]
  %v372 = vld [vmem:[%s5 + $0x178] sm:$0xff]
  %v373 = vld [vmem:[%s5 + $0x180] sm:$0xff]
  %v374 = vld [vmem:[%s5 + $0x188] sm:$0xff]
  %v375 = vld [vmem:[%s5 + $0x190] sm:$0xff]
  %v376 = vld [vmem:[%s5 + $0x198] sm:$0xff]
  %v377 = vld [vmem:[%s5 + $0x1a0] sm:$0xff]
  %v378 = vld [vmem:[%s5 + $0x1a8] sm:$0xff]
  %v379 = vld [vmem:[%s5 + $0x1b0] sm:$0xff]
  %v380 = vld [vmem:[%s5 + $0x1b8] sm:$0xff]
  %v381 = vld [vmem:[%s5 + $0x1c0] sm:$0xff]
  %v382 = vld [vmem:[%s5 + $0x1c8] sm:$0xff]
  %v383 = vld [vmem:[%s5 + $0x1d0] sm:$0xff]
  %v384 = vld [vmem:[%s5 + $0x1d8] sm:$0xff]
  %v385 = vld [vmem:[%s5 + $0x1e0] sm:$0xff]
  %v386 = vld [vmem:[%s5 + $0x1e8] sm:$0xff]
  %v387 = vld [vmem:[%s5 + $0x1f0] sm:$0xff]
  %v388 = vld [vmem:[%s5 + $0x1f8] sm:$0xff]
  %v389 = vld [vmem:[%s6] sm:$0xf]
  %v391 = vlaneseq
  %v392 = vshrl.u32 %v391, 7
  %v393 = vsub.s32 0, %v392
  %v394 = vrot.slane %v389, %v393
  %v395 = vlaneseq
  %v396 = vshrl.u32 %v395, 7
  %v397 = vsub.s32 1, %v396
  %v398 = vrot.slane %v389, %v397
  %v399 = vlaneseq
  %v400 = vshrl.u32 %v399, 7
  %v401 = vsub.s32 2, %v400
  %v402 = vrot.slane %v389, %v401
  %v403 = vlaneseq
  %v404 = vshrl.u32 %v403, 7
  %v405 = vsub.s32 3, %v404
  %v406 = vrot.slane %v389, %v405
  %v475 = vunpack.c.l.b16 %v325
  %v476 = vunpack.c.h.b16 %v325
  %v477 = vunpack.c.l.b16 %v326
  %v478 = vunpack.c.h.b16 %v326
  %v479 = vunpack.c.l.b16 %v327
  %v480 = vunpack.c.h.b16 %v327
  %v481 = vunpack.c.l.b16 %v328
  %v482 = vunpack.c.h.b16 %v328
  %v483 = vunpack.c.l.b16 %v329
  %v484 = vunpack.c.h.b16 %v329
  %v485 = vunpack.c.l.b16 %v330
  %v486 = vunpack.c.h.b16 %v330
  %v487 = vunpack.c.l.b16 %v331
  %v488 = vunpack.c.h.b16 %v331
  %v489 = vunpack.c.l.b16 %v332
  %v490 = vunpack.c.h.b16 %v332
  %v491 = vunpack.c.l.b16 %v333
  %v492 = vunpack.c.h.b16 %v333
  %v493 = vunpack.c.l.b16 %v334
  %v494 = vunpack.c.h.b16 %v334
  %v495 = vunpack.c.l.b16 %v335
  %v496 = vunpack.c.h.b16 %v335
  %v497 = vunpack.c.l.b16 %v336
  %v498 = vunpack.c.h.b16 %v336
  %v499 = vunpack.c.l.b16 %v337
  %v500 = vunpack.c.h.b16 %v337
  %v501 = vunpack.c.l.b16 %v338
  %v502 = vunpack.c.h.b16 %v338
  %v503 = vunpack.c.l.b16 %v339
  %v504 = vunpack.c.h.b16 %v339
  %v505 = vunpack.c.l.b16 %v340
  %v506 = vunpack.c.h.b16 %v340
  %v507 = vunpack.c.l.b16 %v341
  %v508 = vunpack.c.h.b16 %v341
  %v509 = vunpack.c.l.b16 %v342
  %v510 = vunpack.c.h.b16 %v342
  %v511 = vunpack.c.l.b16 %v343
  %v512 = vunpack.c.h.b16 %v343
  %v513 = vunpack.c.l.b16 %v344
  %v514 = vunpack.c.h.b16 %v344
  %v515 = vunpack.c.l.b16 %v345
  %v516 = vunpack.c.h.b16 %v345
  %v517 = vunpack.c.l.b16 %v346
  %v518 = vunpack.c.h.b16 %v346
  %v519 = vunpack.c.l.b16 %v347
  %v520 = vunpack.c.h.b16 %v347
  %v521 = vunpack.c.l.b16 %v348
  %v522 = vunpack.c.h.b16 %v348
  %v523 = vunpack.c.l.b16 %v349
  %v524 = vunpack.c.h.b16 %v349
  %v525 = vunpack.c.l.b16 %v350
  %v526 = vunpack.c.h.b16 %v350
  %v527 = vunpack.c.l.b16 %v351
  %v528 = vunpack.c.h.b16 %v351
  %v529 = vunpack.c.l.b16 %v352
  %v530 = vunpack.c.h.b16 %v352
  %v531 = vunpack.c.l.b16 %v353
  %v532 = vunpack.c.h.b16 %v353
  %v533 = vunpack.c.l.b16 %v354
  %v534 = vunpack.c.h.b16 %v354
  %v535 = vunpack.c.l.b16 %v355
  %v536 = vunpack.c.h.b16 %v355
  %v537 = vunpack.c.l.b16 %v356
  %v538 = vunpack.c.h.b16 %v356
  %v539 = vunpack.c.l.b16 %v357
  %v540 = vunpack.c.h.b16 %v357
  %v541 = vunpack.c.l.b16 %v358
  %v542 = vunpack.c.h.b16 %v358
  %v543 = vunpack.c.l.b16 %v359
  %v544 = vunpack.c.h.b16 %v359
  %v545 = vunpack.c.l.b16 %v360
  %v546 = vunpack.c.h.b16 %v360
  %v547 = vunpack.c.l.b16 %v361
  %v548 = vunpack.c.h.b16 %v361
  %v549 = vunpack.c.l.b16 %v362
  %v550 = vunpack.c.h.b16 %v362
  %v551 = vunpack.c.l.b16 %v363
  %v552 = vunpack.c.h.b16 %v363
  %v553 = vunpack.c.l.b16 %v364
  %v554 = vunpack.c.h.b16 %v364
  %v555 = vunpack.c.l.b16 %v365
  %v556 = vunpack.c.h.b16 %v365
  %v557 = vunpack.c.l.b16 %v366
  %v558 = vunpack.c.h.b16 %v366
  %v559 = vunpack.c.l.b16 %v367
  %v560 = vunpack.c.h.b16 %v367
  %v561 = vunpack.c.l.b16 %v368
  %v562 = vunpack.c.h.b16 %v368
  %v563 = vunpack.c.l.b16 %v369
  %v564 = vunpack.c.h.b16 %v369
  %v565 = vunpack.c.l.b16 %v370
  %v566 = vunpack.c.h.b16 %v370
  %v567 = vunpack.c.l.b16 %v371
  %v568 = vunpack.c.h.b16 %v371
  %v569 = vunpack.c.l.b16 %v372
  %v570 = vunpack.c.h.b16 %v372
  %v571 = vunpack.c.l.b16 %v373
  %v572 = vunpack.c.h.b16 %v373
  %v573 = vunpack.c.l.b16 %v374
  %v574 = vunpack.c.h.b16 %v374
  %v575 = vunpack.c.l.b16 %v375
  %v576 = vunpack.c.h.b16 %v375
  %v577 = vunpack.c.l.b16 %v376
  %v578 = vunpack.c.h.b16 %v376
  %v579 = vunpack.c.l.b16 %v377
  %v580 = vunpack.c.h.b16 %v377
  %v581 = vunpack.c.l.b16 %v378
  %v582 = vunpack.c.h.b16 %v378
  %v583 = vunpack.c.l.b16 %v379
  %v584 = vunpack.c.h.b16 %v379
  %v585 = vunpack.c.l.b16 %v380
  %v586 = vunpack.c.h.b16 %v380
  %v587 = vunpack.c.l.b16 %v381
  %v588 = vunpack.c.h.b16 %v381
  %v589 = vunpack.c.l.b16 %v382
  %v590 = vunpack.c.h.b16 %v382
  %v591 = vunpack.c.l.b16 %v383
  %v592 = vunpack.c.h.b16 %v383
  %v593 = vunpack.c.l.b16 %v384
  %v594 = vunpack.c.h.b16 %v384
  %v595 = vunpack.c.l.b16 %v385
  %v596 = vunpack.c.h.b16 %v385
  %v597 = vunpack.c.l.b16 %v386
  %v598 = vunpack.c.h.b16 %v386
  %v599 = vunpack.c.l.b16 %v387
  %v600 = vunpack.c.h.b16 %v387
  %v601 = vunpack.c.l.b16 %v388
  %v602 = vunpack.c.h.b16 %v388
  %v603 = vpack.c.b16 %v479, %v475
  %v604 = vpack.c.b16 %v480, %v476
  %v605 = vpack.c.b16 %v481, %v477
  %v606 = vpack.c.b16 %v482, %v478
  %v607 = vpack.c.b16 %v487, %v483
  %v608 = vpack.c.b16 %v488, %v484
  %v609 = vpack.c.b16 %v489, %v485
  %v610 = vpack.c.b16 %v490, %v486
  %v611 = vpack.c.b16 %v495, %v491
  %v612 = vpack.c.b16 %v496, %v492
  %v613 = vpack.c.b16 %v497, %v493
  %v614 = vpack.c.b16 %v498, %v494
  %v615 = vpack.c.b16 %v503, %v499
  %v616 = vpack.c.b16 %v504, %v500
  %v617 = vpack.c.b16 %v505, %v501
  %v618 = vpack.c.b16 %v506, %v502
  %v619 = vpack.c.b16 %v511, %v507
  %v620 = vpack.c.b16 %v512, %v508
  %v621 = vpack.c.b16 %v513, %v509
  %v622 = vpack.c.b16 %v514, %v510
  %v623 = vpack.c.b16 %v519, %v515
  %v624 = vpack.c.b16 %v520, %v516
  %v625 = vpack.c.b16 %v521, %v517
  %v626 = vpack.c.b16 %v522, %v518
  %v627 = vpack.c.b16 %v527, %v523
  %v628 = vpack.c.b16 %v528, %v524
  %v629 = vpack.c.b16 %v529, %v525
  %v630 = vpack.c.b16 %v530, %v526
  %v631 = vpack.c.b16 %v535, %v531
  %v632 = vpack.c.b16 %v536, %v532
  %v633 = vpack.c.b16 %v537, %v533
  %v634 = vpack.c.b16 %v538, %v534
  %v635 = vpack.c.b16 %v543, %v539
  %v636 = vpack.c.b16 %v544, %v540
  %v637 = vpack.c.b16 %v545, %v541
  %v638 = vpack.c.b16 %v546, %v542
  %v639 = vpack.c.b16 %v551, %v547
  %v640 = vpack.c.b16 %v552, %v548
  %v641 = vpack.c.b16 %v553, %v549
  %v642 = vpack.c.b16 %v554, %v550
  %v643 = vpack.c.b16 %v559, %v555
  %v644 = vpack.c.b16 %v560, %v556
  %v645 = vpack.c.b16 %v561, %v557
  %v646 = vpack.c.b16 %v562, %v558
  %v647 = vpack.c.b16 %v567, %v563
  %v648 = vpack.c.b16 %v568, %v564
  %v649 = vpack.c.b16 %v569, %v565
  %v650 = vpack.c.b16 %v570, %v566
  %v651 = vpack.c.b16 %v575, %v571
  %v652 = vpack.c.b16 %v576, %v572
  %v653 = vpack.c.b16 %v577, %v573
  %v654 = vpack.c.b16 %v578, %v574
  %v655 = vpack.c.b16 %v583, %v579
  %v656 = vpack.c.b16 %v584, %v580
  %v657 = vpack.c.b16 %v585, %v581
  %v658 = vpack.c.b16 %v586, %v582
  %v659 = vpack.c.b16 %v591, %v587
  %v660 = vpack.c.b16 %v592, %v588
  %v661 = vpack.c.b16 %v593, %v589
  %v662 = vpack.c.b16 %v594, %v590
  %v663 = vpack.c.b16 %v599, %v595
  %v664 = vpack.c.b16 %v600, %v596
  %v665 = vpack.c.b16 %v601, %v597
  %v666 = vpack.c.b16 %v602, %v598
  %731 = vmatprep.subr.bf16.mxu0 %v604
  %732 = vmatpush1.bf16.msra.mxu0 %v603
  %733 = vmatprep.subr.bf16.mxu0 %v608
  %734 = vmatpush1.bf16.msra.mxu0 %v607
  %735 = vmatprep.subr.bf16.mxu0 %v612
  %736 = vmatpush1.bf16.msra.mxu0 %v611
  %737 = vmatprep.subr.bf16.mxu0 %v616
  %738 = vmatpush1.bf16.msra.mxu0 %v615
  %739 = vmatprep.subr.bf16.mxu0 %v620
  %740 = vmatpush1.bf16.msra.mxu0 %v619
  %741 = vmatprep.subr.bf16.mxu0 %v624
  %742 = vmatpush1.bf16.msra.mxu0 %v623
  %743 = vmatprep.subr.bf16.mxu0 %v628
  %744 = vmatpush1.bf16.msra.mxu0 %v627
  %745 = vmatprep.subr.bf16.mxu0 %v632
  %746 = vmatpush1.bf16.msra.mxu0 %v631
  %747 = vmatprep.subr.bf16.mxu0 %v636
  %748 = vmatpush1.bf16.msra.mxu0 %v635
  %749 = vmatprep.subr.bf16.mxu0 %v640
  %750 = vmatpush1.bf16.msra.mxu0 %v639
  %751 = vmatprep.subr.bf16.mxu0 %v644
  %752 = vmatpush1.bf16.msra.mxu0 %v643
  %753 = vmatprep.subr.bf16.mxu0 %v648
  %754 = vmatpush1.bf16.msra.mxu0 %v647
  %755 = vmatprep.subr.bf16.mxu0 %v652
  %756 = vmatpush1.bf16.msra.mxu0 %v651
  %757 = vmatprep.subr.bf16.mxu0 %v656
  %758 = vmatpush1.bf16.msra.mxu0 %v655
  %759 = vmatprep.subr.bf16.mxu0 %v660
  %760 = vmatpush1.bf16.msra.mxu0 %v659
  %761 = vmatprep.subr.bf16.mxu0 %v664
  %762 = vmatpush1.bf16.msra.mxu0 %v663
  %763 = vmatprep.mubr.bf16.mxu0 %v324
  %764 = vmatmul.mubr.bf16.gmra.mrb[0].mxu0 %v323
  %v765 = vpop.f32.mrb[0].mxu0
  %v766 = vadd.f32 %v394, %v765
  %v767 = vpop.f32.mrb[0].mxu0
  %v768 = vadd.f32 %v398, %v767
  %v769 = vpop.f32.mrb[0].mxu0
  %v770 = vadd.f32 %v394, %v769
  %v771 = vpop.f32.mrb[0].mxu0
  %v772 = vadd.f32 %v398, %v771
  %773 = vdwg.mxu0
  %774 = vmatprep.subr.bf16.mxu0 %v606
  %775 = vmatpush1.bf16.msra.mxu0 %v605
  %776 = vmatprep.subr.bf16.mxu0 %v610
  %777 = vmatpush1.bf16.msra.mxu0 %v609
  %778 = vmatprep.subr.bf16.mxu0 %v614
  %779 = vmatpush1.bf16.msra.mxu0 %v613
  %780 = vmatprep.subr.bf16.mxu0 %v618
  %781 = vmatpush1.bf16.msra.mxu0 %v617
  %782 = vmatprep.subr.bf16.mxu0 %v622
  %783 = vmatpush1.bf16.msra.mxu0 %v621
  %784 = vmatprep.subr.bf16.mxu0 %v626
  %785 = vmatpush1.bf16.msra.mxu0 %v625
  %786 = vmatprep.subr.bf16.mxu0 %v630
  %787 = vmatpush1.bf16.msra.mxu0 %v629
  %788 = vmatprep.subr.bf16.mxu0 %v634
  %789 = vmatpush1.bf16.msra.mxu0 %v633
  %790 = vmatprep.subr.bf16.mxu0 %v638
  %791 = vmatpush1.bf16.msra.mxu0 %v637
  %792 = vmatprep.subr.bf16.mxu0 %v642
  %793 = vmatpush1.bf16.msra.mxu0 %v641
  %794 = vmatprep.subr.bf16.mxu0 %v646
  %795 = vmatpush1.bf16.msra.mxu0 %v645
  %796 = vmatprep.subr.bf16.mxu0 %v650
  %797 = vmatpush1.bf16.msra.mxu0 %v649
  %798 = vmatprep.subr.bf16.mxu0 %v654
  %799 = vmatpush1.bf16.msra.mxu0 %v653
  %800 = vmatprep.subr.bf16.mxu0 %v658
  %801 = vmatpush1.bf16.msra.mxu0 %v657
  %802 = vmatprep.subr.bf16.mxu0 %v662
  %803 = vmatpush1.bf16.msra.mxu0 %v661
  %804 = vmatprep.subr.bf16.mxu0 %v666
  %805 = vmatpush1.bf16.msra.mxu0 %v665
  %806 = vmatprep.mubr.bf16.mxu0 %v324
  %807 = vmatmul.mubr.bf16.gmra.mrb[0].mxu0 %v323
  %v808 = vpop.f32.mrb[0].mxu0
  %v809 = vadd.f32 %v402, %v808
  %v810 = vpop.f32.mrb[0].mxu0
  %v811 = vadd.f32 %v406, %v810
  %v812 = vpop.f32.mrb[0].mxu0
  %v813 = vadd.f32 %v402, %v812
  %v814 = vpop.f32.mrb[0].mxu0
  %v815 = vadd.f32 %v406, %v814
  %816 = vdwg.mxu0
  %vm817 = vcmp.ge.f32.partialorder %v766, 0.0
  %vm818 = vcmp.ge.f32.partialorder %v768, 0.0
  %vm819 = vcmp.ge.f32.partialorder %v809, 0.0
  %vm820 = vcmp.ge.f32.partialorder %v811, 0.0
  %vm821 = vcmp.ge.f32.partialorder %v770, 0.0
  %vm822 = vcmp.ge.f32.partialorder %v772, 0.0
  %vm823 = vcmp.ge.f32.partialorder %v813, 0.0
  %vm824 = vcmp.ge.f32.partialorder %v815, 0.0
  %v825 = vmul.f32 %v766, 0.2
  %v826 = vmul.f32 %v768, 0.2
  %v827 = vmul.f32 %v809, 0.2
  %v828 = vmul.f32 %v811, 0.2
  %v829 = vmul.f32 %v770, 0.2
  %v830 = vmul.f32 %v772, 0.2
  %v831 = vmul.f32 %v813, 0.2
  %v832 = vmul.f32 %v815, 0.2
  %v833 = vsel %vm817, %v766, %v825
  %v834 = vsel %vm818, %v768, %v826
  %v835 = vsel %vm819, %v809, %v827
  %v836 = vsel %vm820, %v811, %v828
  %v837 = vsel %vm821, %v770, %v829
  %v838 = vsel %vm822, %v772, %v830
  %v839 = vsel %vm823, %v813, %v831
  %v840 = vsel %vm824, %v815, %v832
  %v841 = vpack.c.bf16 %v837, %v833
  %v842 = vpack.c.bf16 %v838, %v834
  %v843 = vpack.c.bf16 %v839, %v835
  %v844 = vpack.c.bf16 %v840, %v836
  %v845 = vld [vmem:[%s7] sm:$0xf]
  %v846 = vld [vmem:[%s7 + $0x4] sm:$0xf]
  %v847 = vld [vmem:[%s7 + $0x8] sm:$0xf]
  %v848 = vld [vmem:[%s7 + $0xc] sm:$0xf]
  %v849 = vld [vmem:[%s7 + $0x10] sm:$0xf]
  %v850 = vld [vmem:[%s7 + $0x14] sm:$0xf]
  %v851 = vld [vmem:[%s7 + $0x18] sm:$0xf]
  %v852 = vld [vmem:[%s7 + $0x1c] sm:$0xf]
  %v853 = vld [vmem:[%s7 + $0x20] sm:$0xf]
  %v854 = vld [vmem:[%s7 + $0x24] sm:$0xf]
  %v855 = vld [vmem:[%s7 + $0x28] sm:$0xf]
  %v856 = vld [vmem:[%s7 + $0x2c] sm:$0xf]
  %v857 = vld [vmem:[%s7 + $0x30] sm:$0xf]
  %v858 = vld [vmem:[%s7 + $0x34] sm:$0xf]
  %v859 = vld [vmem:[%s7 + $0x38] sm:$0xf]
  %v860 = vld [vmem:[%s7 + $0x3c] sm:$0xf]
  %v861 = vld [vmem:[%s7 + $0x40] sm:$0xf]
  %v862 = vld [vmem:[%s7 + $0x44] sm:$0xf]
  %v863 = vld [vmem:[%s7 + $0x48] sm:$0xf]
  %v864 = vld [vmem:[%s7 + $0x4c] sm:$0xf]
  %v865 = vld [vmem:[%s7 + $0x50] sm:$0xf]
  %v866 = vld [vmem:[%s7 + $0x54] sm:$0xf]
  %v867 = vld [vmem:[%s7 + $0x58] sm:$0xf]
  %v868 = vld [vmem:[%s7 + $0x5c] sm:$0xf]
  %v869 = vld [vmem:[%s7 + $0x60] sm:$0xf]
  %v870 = vld [vmem:[%s7 + $0x64] sm:$0xf]
  %v871 = vld [vmem:[%s7 + $0x68] sm:$0xf]
  %v872 = vld [vmem:[%s7 + $0x6c] sm:$0xf]
  %v873 = vld [vmem:[%s7 + $0x70] sm:$0xf]
  %v874 = vld [vmem:[%s7 + $0x74] sm:$0xf]
  %v875 = vld [vmem:[%s7 + $0x78] sm:$0xf]
  %v876 = vld [vmem:[%s7 + $0x7c] sm:$0xf]
  %v877 = vld [vmem:[%s7 + $0x80] sm:$0xf]
  %v878 = vld [vmem:[%s7 + $0x84] sm:$0xf]
  %v879 = vld [vmem:[%s7 + $0x88] sm:$0xf]
  %v880 = vld [vmem:[%s7 + $0x8c] sm:$0xf]
  %v881 = vld [vmem:[%s7 + $0x90] sm:$0xf]
  %v882 = vld [vmem:[%s7 + $0x94] sm:$0xf]
  %v883 = vld [vmem:[%s7 + $0x98] sm:$0xf]
  %v884 = vld [vmem:[%s7 + $0x9c] sm:$0xf]
  %v885 = vld [vmem:[%s7 + $0xa0] sm:$0xf]
  %v886 = vld [vmem:[%s7 + $0xa4] sm:$0xf]
  %v887 = vld [vmem:[%s7 + $0xa8] sm:$0xf]
  %v888 = vld [vmem:[%s7 + $0xac] sm:$0xf]
  %v889 = vld [vmem:[%s7 + $0xb0] sm:$0xf]
  %v890 = vld [vmem:[%s7 + $0xb4] sm:$0xf]
  %v891 = vld [vmem:[%s7 + $0xb8] sm:$0xf]
  %v892 = vld [vmem:[%s7 + $0xbc] sm:$0xf]
  %v893 = vld [vmem:[%s7 + $0xc0] sm:$0xf]
  %v894 = vld [vmem:[%s7 + $0xc4] sm:$0xf]
  %v895 = vld [vmem:[%s7 + $0xc8] sm:$0xf]
  %v896 = vld [vmem:[%s7 + $0xcc] sm:$0xf]
  %v897 = vld [vmem:[%s7 + $0xd0] sm:$0xf]
  %v898 = vld [vmem:[%s7 + $0xd4] sm:$0xf]
  %v899 = vld [vmem:[%s7 + $0xd8] sm:$0xf]
  %v900 = vld [vmem:[%s7 + $0xdc] sm:$0xf]
  %v901 = vld [vmem:[%s7 + $0xe0] sm:$0xf]
  %v902 = vld [vmem:[%s7 + $0xe4] sm:$0xf]
  %v903 = vld [vmem:[%s7 + $0xe8] sm:$0xf]
  %v904 = vld [vmem:[%s7 + $0xec] sm:$0xf]
  %v905 = vld [vmem:[%s7 + $0xf0] sm:$0xf]
  %v906 = vld [vmem:[%s7 + $0xf4] sm:$0xf]
  %v907 = vld [vmem:[%s7 + $0xf8] sm:$0xf]
  %v908 = vld [vmem:[%s7 + $0xfc] sm:$0xf]
  %v909 = vld [vmem:[%s8] sm:$0x1]
  %v911 = vlaneseq
  %v912 = vshrl.u32 %v911, 7
  %v913 = vsub.s32 0, %v912
  %v914 = vrot.slane %v909, %v913
  %v980 = vunpack.c.l.b16 %v845
  %v981 = vunpack.c.l.b16 %v846
  %v982 = vunpack.c.l.b16 %v847
  %v983 = vunpack.c.l.b16 %v848
  %v984 = vunpack.c.l.b16 %v849
  %v985 = vunpack.c.l.b16 %v850
  %v986 = vunpack.c.l.b16 %v851
  %v987 = vunpack.c.l.b16 %v852
  %v988 = vunpack.c.l.b16 %v853
  %v989 = vunpack.c.l.b16 %v854
  %v990 = vunpack.c.l.b16 %v855
  %v991 = vunpack.c.l.b16 %v856
  %v992 = vunpack.c.l.b16 %v857
  %v993 = vunpack.c.l.b16 %v858
  %v994 = vunpack.c.l.b16 %v859
  %v995 = vunpack.c.l.b16 %v860
  %v996 = vunpack.c.l.b16 %v861
  %v997 = vunpack.c.l.b16 %v862
  %v998 = vunpack.c.l.b16 %v863
  %v999 = vunpack.c.l.b16 %v864
  %v1000 = vunpack.c.l.b16 %v865
  %v1001 = vunpack.c.l.b16 %v866
  %v1002 = vunpack.c.l.b16 %v867
  %v1003 = vunpack.c.l.b16 %v868
  %v1004 = vunpack.c.l.b16 %v869
  %v1005 = vunpack.c.l.b16 %v870
  %v1006 = vunpack.c.l.b16 %v871
  %v1007 = vunpack.c.l.b16 %v872
  %v1008 = vunpack.c.l.b16 %v873
  %v1009 = vunpack.c.l.b16 %v874
  %v1010 = vunpack.c.l.b16 %v875
  %v1011 = vunpack.c.l.b16 %v876
  %v1012 = vunpack.c.l.b16 %v877
  %v1013 = vunpack.c.l.b16 %v878
  %v1014 = vunpack.c.l.b16 %v879
  %v1015 = vunpack.c.l.b16 %v880
  %v1016 = vunpack.c.l.b16 %v881
  %v1017 = vunpack.c.l.b16 %v882
  %v1018 = vunpack.c.l.b16 %v883
  %v1019 = vunpack.c.l.b16 %v884
  %v1020 = vunpack.c.l.b16 %v885
  %v1021 = vunpack.c.l.b16 %v886
  %v1022 = vunpack.c.l.b16 %v887
  %v1023 = vunpack.c.l.b16 %v888
  %v1024 = vunpack.c.l.b16 %v889
  %v1025 = vunpack.c.l.b16 %v890
  %v1026 = vunpack.c.l.b16 %v891
  %v1027 = vunpack.c.l.b16 %v892
  %v1028 = vunpack.c.l.b16 %v893
  %v1029 = vunpack.c.l.b16 %v894
  %v1030 = vunpack.c.l.b16 %v895
  %v1031 = vunpack.c.l.b16 %v896
  %v1032 = vunpack.c.l.b16 %v897
  %v1033 = vunpack.c.l.b16 %v898
  %v1034 = vunpack.c.l.b16 %v899
  %v1035 = vunpack.c.l.b16 %v900
  %v1036 = vunpack.c.l.b16 %v901
  %v1037 = vunpack.c.l.b16 %v902
  %v1038 = vunpack.c.l.b16 %v903
  %v1039 = vunpack.c.l.b16 %v904
  %v1040 = vunpack.c.l.b16 %v905
  %v1041 = vunpack.c.l.b16 %v906
  %v1042 = vunpack.c.l.b16 %v907
  %v1043 = vunpack.c.l.b16 %v908
  %v1044 = vpack.c.b16 %v981, %v980
  %v1045 = vpack.c.b16 %v983, %v982
  %v1046 = vpack.c.b16 %v985, %v984
  %v1047 = vpack.c.b16 %v987, %v986
  %v1048 = vpack.c.b16 %v989, %v988
  %v1049 = vpack.c.b16 %v991, %v990
  %v1050 = vpack.c.b16 %v993, %v992
  %v1051 = vpack.c.b16 %v995, %v994
  %v1052 = vpack.c.b16 %v997, %v996
  %v1053 = vpack.c.b16 %v999, %v998
  %v1054 = vpack.c.b16 %v1001, %v1000
  %v1055 = vpack.c.b16 %v1003, %v1002
  %v1056 = vpack.c.b16 %v1005, %v1004
  %v1057 = vpack.c.b16 %v1007, %v1006
  %v1058 = vpack.c.b16 %v1009, %v1008
  %v1059 = vpack.c.b16 %v1011, %v1010
  %v1060 = vpack.c.b16 %v1013, %v1012
  %v1061 = vpack.c.b16 %v1015, %v1014
  %v1062 = vpack.c.b16 %v1017, %v1016
  %v1063 = vpack.c.b16 %v1019, %v1018
  %v1064 = vpack.c.b16 %v1021, %v1020
  %v1065 = vpack.c.b16 %v1023, %v1022
  %v1066 = vpack.c.b16 %v1025, %v1024
  %v1067 = vpack.c.b16 %v1027, %v1026
  %v1068 = vpack.c.b16 %v1029, %v1028
  %v1069 = vpack.c.b16 %v1031, %v1030
  %v1070 = vpack.c.b16 %v1033, %v1032
  %v1071 = vpack.c.b16 %v1035, %v1034
  %v1072 = vpack.c.b16 %v1037, %v1036
  %v1073 = vpack.c.b16 %v1039, %v1038
  %v1074 = vpack.c.b16 %v1041, %v1040
  %v1075 = vpack.c.b16 %v1043, %v1042
  %1108 = vmatprep.subr.bf16.mxu0 0
  %1109 = vmatpush1.bf16.msra.mxu0 %v1044
  %1110 = vmatprep.subr.bf16.mxu0 0
  %1111 = vmatpush1.bf16.msra.mxu0 %v1045
  %1112 = vmatprep.subr.bf16.mxu0 0
  %1113 = vmatpush1.bf16.msra.mxu0 %v1046
  %1114 = vmatprep.subr.bf16.mxu0 0
  %1115 = vmatpush1.bf16.msra.mxu0 %v1047
  %1116 = vmatprep.subr.bf16.mxu0 0
  %1117 = vmatpush1.bf16.msra.mxu0 %v1048
  %1118 = vmatprep.subr.bf16.mxu0 0
  %1119 = vmatpush1.bf16.msra.mxu0 %v1049
  %1120 = vmatprep.subr.bf16.mxu0 0
  %1121 = vmatpush1.bf16.msra.mxu0 %v1050
  %1122 = vmatprep.subr.bf16.mxu0 0
  %1123 = vmatpush1.bf16.msra.mxu0 %v1051
  %1124 = vmatprep.subr.bf16.mxu0 0
  %1125 = vmatpush1.bf16.msra.mxu0 %v1052
  %1126 = vmatprep.subr.bf16.mxu0 0
  %1127 = vmatpush1.bf16.msra.mxu0 %v1053
  %1128 = vmatprep.subr.bf16.mxu0 0
  %1129 = vmatpush1.bf16.msra.mxu0 %v1054
  %1130 = vmatprep.subr.bf16.mxu0 0
  %1131 = vmatpush1.bf16.msra.mxu0 %v1055
  %1132 = vmatprep.subr.bf16.mxu0 0
  %1133 = vmatpush1.bf16.msra.mxu0 %v1056
  %1134 = vmatprep.subr.bf16.mxu0 0
  %1135 = vmatpush1.bf16.msra.mxu0 %v1057
  %1136 = vmatprep.subr.bf16.mxu0 0
  %1137 = vmatpush1.bf16.msra.mxu0 %v1058
  %1138 = vmatprep.subr.bf16.mxu0 0
  %1139 = vmatpush1.bf16.msra.mxu0 %v1059
  %1140 = vmatprep.mubr.bf16.mxu0 %v842
  %1141 = vmatmul.mubr.bf16.gmra.mrb[0].mxu0 %v841
  %v1142 = vpop.f32.mrb[0].mxu0
  %v1143 = vadd.f32 %v914, %v1142
  %v1144 = vpop.f32.mrb[0].mxu0
  %v1145 = vpop.f32.mrb[0].mxu0
  %v1146 = vadd.f32 %v914, %v1145
  %v1147 = vpop.f32.mrb[0].mxu0
  %1148 = vdwg.mxu0
  %1149 = vmatprep.subr.bf16.mxu0 0
  %1150 = vmatpush1.bf16.msra.mxu0 %v1060
  %1151 = vmatprep.subr.bf16.mxu0 0
  %1152 = vmatpush1.bf16.msra.mxu0 %v1061
  %1153 = vmatprep.subr.bf16.mxu0 0
  %1154 = vmatpush1.bf16.msra.mxu0 %v1062
  %1155 = vmatprep.subr.bf16.mxu0 0
  %1156 = vmatpush1.bf16.msra.mxu0 %v1063
  %1157 = vmatprep.subr.bf16.mxu0 0
  %1158 = vmatpush1.bf16.msra.mxu0 %v1064
  %1159 = vmatprep.subr.bf16.mxu0 0
  %1160 = vmatpush1.bf16.msra.mxu0 %v1065
  %1161 = vmatprep.subr.bf16.mxu0 0
  %1162 = vmatpush1.bf16.msra.mxu0 %v1066
  %1163 = vmatprep.subr.bf16.mxu0 0
  %1164 = vmatpush1.bf16.msra.mxu0 %v1067
  %1165 = vmatprep.subr.bf16.mxu0 0
  %1166 = vmatpush1.bf16.msra.mxu0 %v1068
  %1167 = vmatprep.subr.bf16.mxu0 0
  %1168 = vmatpush1.bf16.msra.mxu0 %v1069
  %1169 = vmatprep.subr.bf16.mxu0 0
  %1170 = vmatpush1.bf16.msra.mxu0 %v1070
  %1171 = vmatprep.subr.bf16.mxu0 0
  %1172 = vmatpush1.bf16.msra.mxu0 %v1071
  %1173 = vmatprep.subr.bf16.mxu0 0
  %1174 = vmatpush1.bf16.msra.mxu0 %v1072
  %1175 = vmatprep.subr.bf16.mxu0 0
  %1176 = vmatpush1.bf16.msra.mxu0 %v1073
  %1177 = vmatprep.subr.bf16.mxu0 0
  %1178 = vmatpush1.bf16.msra.mxu0 %v1074
  %1179 = vmatprep.subr.bf16.mxu0 0
  %1180 = vmatpush1.bf16.msra.mxu0 %v1075
  %1181 = vmatprep.mubr.bf16.mxu0 %v844
  %1182 = vmatmul.mubr.bf16.gmra.mrb[0].mxu0 %v843
  %v1183 = vpop.f32.mrb[0].mxu0
  %v1184 = vadd.f32 %v1143, %v1183
  %v1185 = vpop.f32.mrb[0].mxu0
  %v1186 = vpop.f32.mrb[0].mxu0
  %v1187 = vadd.f32 %v1146, %v1186
  %v1188 = vpop.f32.mrb[0].mxu0
  %1189 = vdwg.mxu0
  %v1190 = vtanh.pop %v1184
  %v1191 = vtanh.pop %v1187
  %1192 = vst [vmem:[%s9] sm:$0xff] %v1190
  %1193 = vst [vmem:[%s9 + $0x8] sm:$0xff] %v1191
  // Predicated region
  $region38: #{generator_forward.1} parent=0 // pred_check
    _
  $region39: #{generator_forward.1} parent=0 // pred_check_branch
    %1195 = sbr.rel (0) target = $region41
  $region40: #{generator_forward.1} parent=0 // pred_region
    _
  $region41: #{generator_forward.1} parent=0 // pred_fallthru
    _
  // Predicated region
  $region42: #{generator_forward.1} parent=0 // pred_check
    _
  $region43: #{generator_forward.1} parent=0 // pred_check_branch
    %1197 = sbr.rel (0) target = $region45
  $region44: #{generator_forward.1} parent=0 // pred_region
    _
  $region45: #{generator_forward.1} parent=0 // pred_fallthru
    _

</llo_original>
